<compile_context>
chip_gen: v7x
topology: tpu7x:2x2x1
jax: 0.10.0
libtpu: 0.0.40
codegen_flags: <defaults>
</compile_context>

<pallas_src>
import functools

import numpy as np
import jax
import jax.numpy as jnp
from jax import lax
from jax.experimental import pallas as pl
from jax.experimental.pallas import tpu as pltpu


# ---------------------------------------------------------------------------
# Generation-aware VMEM limit
# ---------------------------------------------------------------------------
_VMEM_LIMIT = None


def _vmem_limit():
    """~96 MiB on 128-MiB chips (v5e/v6e), <=~40 MiB on v7x (64 MiB)."""
    global _VMEM_LIMIT
    if _VMEM_LIMIT is None:
        cap = 128 * 1024 * 1024
        try:
            cap = int(pltpu.get_tpu_info().vmem_capacity_bytes)
        except Exception:
            pass
        if cap >= 96 * 1024 * 1024:
            _VMEM_LIMIT = 96 * 1024 * 1024
        else:
            _VMEM_LIMIT = min(40 * 1024 * 1024, (cap * 5) // 8)
    return _VMEM_LIMIT


# ---------------------------------------------------------------------------
# Single-buffering support probe for grid-invariant blocks.
# ---------------------------------------------------------------------------
_SINGLE_BUFFER_OK = None


def _single_buffer_supported():
    """Probe whether this backend accepts pipeline_mode=pl.Buffered(1)."""
    global _SINGLE_BUFFER_OK
    if _SINGLE_BUFFER_OK is None:
        try:
            def _copy(x_ref, o_ref):
                o_ref[...] = x_ref[...]

            spec = pl.BlockSpec((8, 128), lambda i: (0, 0),
                                pipeline_mode=pl.Buffered(1))
            out = pl.pallas_call(
                _copy,
                out_shape=jax.ShapeDtypeStruct((8, 128), jnp.float32),
                grid=(1,),
                in_specs=[spec],
                out_specs=pl.BlockSpec((8, 128), lambda i: (0, 0)),
            )(jnp.zeros((8, 128), jnp.float32))
            jax.block_until_ready(out)
            _SINGLE_BUFFER_OK = True
        except Exception:
            _SINGLE_BUFFER_OK = False
    return _SINGLE_BUFFER_OK


def _const_spec(shape):
    """BlockSpec for grid-invariant operands (weights / biases / LN params).

    Their block index never changes across the grid, so the second pipeline
    buffer is pure VMEM waste -> single-buffer when the backend supports it.
    """
    index_map = lambda *_: (0,) * len(shape)
    if _single_buffer_supported():
        return pl.BlockSpec(shape, index_map, pipeline_mode=pl.Buffered(1))
    return pl.BlockSpec(shape, index_map)


def _pick_tile(total, target, multiple):
    """Largest divisor of `total` that is <= target and a multiple of
    `multiple`; falls back to the full extent (always a legal block)."""
    if total <= target:
        return total
    for t in range(min(target, total), 0, -1):
        if total % t == 0 and t % multiple == 0:
            return t
    return total


# ---------------------------------------------------------------------------
# In-kernel helpers
# ---------------------------------------------------------------------------
def _layernorm(x, gamma, beta, eps=1e-5):
    mu = jnp.mean(x, axis=-1, keepdims=True)
    var = jnp.mean((x - mu) ** 2, axis=-1, keepdims=True)
    return (x - mu) * lax.rsqrt(var + eps) * gamma + beta


# ---------------------------------------------------------------------------
# Fused Q/K/V projection: grid = (row tile,), rows = flattened (B*N).
# ---------------------------------------------------------------------------
def qkv_proj_kernel(scale, x_ref, w_ref, b_ref, q_ref, k_ref, v_ref):
    f32 = jnp.float32
    cdt = w_ref.dtype                              # compute dtype (bf16/f32)
    D = x_ref.shape[-1]
    qkv = (jnp.dot(x_ref[...].astype(cdt), w_ref[...],
                   preferred_element_type=f32)
           + b_ref[...].astype(f32))               # (tr, 3D), f32 accumulate
    # Fold 1/sqrt(dh) into Q so the score tile never needs scaling.
    q_ref[...] = (qkv[:, :D] * scale).astype(q_ref.dtype)
    k_ref[...] = qkv[:, D:2 * D].astype(k_ref.dtype)
    v_ref[...] = qkv[:, 2 * D:].astype(v_ref.dtype)


# ---------------------------------------------------------------------------
# Attention + sublayers: grid = (batch, query tile, kv tile).
# kv axis is the (innermost) reduction -> flash-style online softmax.
# ---------------------------------------------------------------------------
def attn_block_kernel(heads, x_ref, q_ref, k_ref, v_ref, pm_ref,
                      wo_ref, bo_ref, g_ref, b_ref, out_ref,
                      m_sc, l_sc, acc_sc):
    f32 = jnp.float32
    ki = pl.program_id(2)
    nk = pl.num_programs(2)

    @pl.when(ki == 0)
    def _():
        m_sc[...] = jnp.full_like(m_sc, -jnp.inf)
        l_sc[...] = jnp.zeros_like(l_sc)
        acc_sc[...] = jnp.zeros_like(acc_sc)

    q = q_ref[0]                                   # (tq, D), compute dtype
    k = k_ref[0]                                   # (tk, D)
    v = v_ref[0]                                   # (tk, D)
    tq, D = q.shape
    tk = k.shape[0]
    dh = D // heads

    # Head-batched attention in the compute dtype (bf16 MXU, f32 accumulate).
    qh = jnp.transpose(q.reshape(tq, heads, dh), (1, 0, 2))   # (H, tq, dh)
    kh = jnp.transpose(k.reshape(tk, heads, dh), (1, 0, 2))   # (H, tk, dh)
    vh = jnp.transpose(v.reshape(tk, heads, dh), (1, 0, 2))   # (H, tk, dh)

    s = jnp.einsum("hqd,hkd->hqk", qh, kh,
                   preferred_element_type=f32)                # (H, tq, tk)

    # Causal mask built in-kernel from iotas (no N^2 HBM stream);
    # pad mask streamed as a (1, 1, tk) row per batch element.
    rows = pl.program_id(1) * tq + lax.broadcasted_iota(jnp.int32, (tq, tk), 0)
    cols = ki * tk + lax.broadcasted_iota(jnp.int32, (tq, tk), 1)
    masked = jnp.logical_or(cols > rows, pm_ref[0] > 0.5)     # (tq, tk)
    s = jnp.where(masked[None, :, :], -1e9, s)

    # Online softmax update.
    m_prev = m_sc[...]
    m_new = jnp.maximum(m_prev, jnp.max(s, axis=-1, keepdims=True))
    alpha = jnp.exp(m_prev - m_new)
    p = jnp.exp(s - m_new)
    l_sc[...] = alpha * l_sc[...] + jnp.sum(p, axis=-1, keepdims=True)
    acc_sc[...] = alpha * acc_sc[...] + jnp.einsum(
        "hqk,hkd->hqd", p.astype(v.dtype), vh, preferred_element_type=f32)
    m_sc[...] = m_new

    @pl.when(ki == nk - 1)
    def _():
        # EUP reciprocal instead of a VALU divide over the (H, tq, dh) tile.
        attn = acc_sc[...] * pl.reciprocal(l_sc[...], approx=True)
        attn = jnp.transpose(attn, (1, 0, 2)).reshape(tq, D)  # (tq, D)

        xq = x_ref[0].astype(f32)
        gamma = g_ref[...].astype(f32)
        beta = b_ref[...].astype(f32)
        cdt = wo_ref.dtype
        # TODO(synk): Dropout(p=0.2) is treated as identity (inference mode).
        h1 = _layernorm(xq + attn, gamma, beta)
        lin = jnp.maximum(
            jnp.dot(h1.astype(cdt), wo_ref[...], preferred_element_type=f32)
            + bo_ref[...].astype(f32), 0.0)
        out = _layernorm(h1 + lin, gamma, beta)
        out_ref[0] = out.astype(out_ref.dtype)


def transformer_block(x, pm_b1n, p, heads, tq=None, tk=None):
    B, N, D = x.shape
    dh = D // heads
    scale = 1.0 / float(np.sqrt(dh))
    cdt = p["wqkv"].dtype

    # ---- 1) fused Q/K/V projection over flattened rows (hoisted) ----------
    R = B * N
    tr = _pick_tile(R, 256, 16)
    x2 = x.reshape(R, D)
    q2, k2, v2 = pl.pallas_call(
        functools.partial(qkv_proj_kernel, scale),
        out_shape=[jax.ShapeDtypeStruct((R, D), cdt)] * 3,
        grid=(R // tr,),
        in_specs=[pl.BlockSpec((tr, D), lambda r: (r, 0)),
                  _const_spec((D, 3 * D)),
                  _const_spec((1, 3 * D))],
        out_specs=[pl.BlockSpec((tr, D), lambda r: (r, 0))] * 3,
        compiler_params=pltpu.CompilerParams(
            dimension_semantics=("parallel",),
            vmem_limit_bytes=_vmem_limit()),
    )(x2, p["wqkv"], p["bqkv"])
    q = q2.reshape(B, N, D)
    k = k2.reshape(B, N, D)
    v = v2.reshape(B, N, D)

    # ---- 2) flash-style attention + residual/LN/Linear+ReLU/LN ------------
    tq = _pick_tile(N, tq or 256, 16)     # MXU M dim; never a tiny tile
    tk = _pick_tile(N, tk or 512, 128)    # kv chunk (lane-aligned pad mask)
    nq, nk = N // tq, N // tk

    kern = functools.partial(attn_block_kernel, heads)
    return pl.pallas_call(
        kern,
        out_shape=jax.ShapeDtypeStruct((B, N, D), x.dtype),
        grid=(B, nq, nk),
        in_specs=[
            pl.BlockSpec((1, tq, D), lambda b, qi, ki: (b, qi, 0)),  # residual
            pl.BlockSpec((1, tq, D), lambda b, qi, ki: (b, qi, 0)),  # Q tile
            pl.BlockSpec((1, tk, D), lambda b, qi, ki: (b, ki, 0)),  # K tile
            pl.BlockSpec((1, tk, D), lambda b, qi, ki: (b, ki, 0)),  # V tile
            pl.BlockSpec((1, 1, tk), lambda b, qi, ki: (b, 0, ki)),  # pad mask
            _const_spec((D, D)), _const_spec((1, D)),                # Wout, bout
            _const_spec((1, D)), _const_spec((1, D)),                # LN g, b
        ],
        out_specs=pl.BlockSpec((1, tq, D), lambda b, qi, ki: (b, qi, 0)),
        scratch_shapes=[pltpu.VMEM((heads, tq, 1), jnp.float32),     # m
                        pltpu.VMEM((heads, tq, 1), jnp.float32),     # l
                        pltpu.VMEM((heads, tq, dh), jnp.float32)],   # acc
        compiler_params=pltpu.CompilerParams(
            dimension_semantics=("parallel", "parallel", "arbitrary"),
            vmem_limit_bytes=_vmem_limit()),
    )(x, q, k, v, pm_b1n, p["wo"], p["bo"], p["ln_g"], p["ln_b"])


# ---------------------------------------------------------------------------
# Final vocab projection: rows flattened, vocab axis OUTER (weight tile
# DMA'd once), rows inner.
# ---------------------------------------------------------------------------
def vocab_proj_kernel(x_ref, w_ref, b_ref, out_ref):
    f32 = jnp.float32
    cdt = w_ref.dtype
    y = (jnp.dot(x_ref[...].astype(cdt), w_ref[...],
                 preferred_element_type=f32)
         + b_ref[...].astype(f32))
    out_ref[...] = y.astype(out_ref.dtype)


def output_projection(x, w, b, out_dtype, tm=None, tv=None):
    B, N, D = x.shape
    V = w.shape[1]
    R = B * N
    x2 = x.reshape(R, D)
    tm = _pick_tile(R, tm or 256, 16)
    tv = _pick_tile(V, tv or 512, 128)
    out = pl.pallas_call(
        vocab_proj_kernel,
        out_shape=jax.ShapeDtypeStruct((R, V), out_dtype),
        grid=(V // tv, R // tm),                       # vocab outer, rows inner
        in_specs=[pl.BlockSpec((tm, D), lambda vi, r: (r, 0)),
                  pl.BlockSpec((D, tv), lambda vi, r: (0, vi)),
                  pl.BlockSpec((1, tv), lambda vi, r: (0, vi))],
        out_specs=pl.BlockSpec((tm, tv), lambda vi, r: (r, vi)),
        compiler_params=pltpu.CompilerParams(
            dimension_semantics=("parallel", "parallel"),
            vmem_limit_bytes=_vmem_limit()),
    )(x2, w, b)
    return out.reshape(B, N, V)


# ---------------------------------------------------------------------------
# Parameter init (deterministic, synthetic) + full forward
# ---------------------------------------------------------------------------
def init_params(key, dims, heads, nblocks, vocab_size, maxlen, padding_idx,
                dtype=jnp.bfloat16):
    """dtype=bf16 halves weight HBM/VMEM traffic and enables bf16 MXU;
    all kernels accumulate in f32."""
    del heads  # head split happens inside the kernel
    keys = jax.random.split(key, nblocks + 2)
    s = 1.0 / np.sqrt(dims)

    emb = 0.02 * jax.random.normal(keys[0], (vocab_size, dims), jnp.float32)
    emb = emb.at[padding_idx].set(0.0)

    # sinusoidal positional encodings (same formula as the PyTorch module)
    position = jnp.arange(maxlen, dtype=jnp.float32)[:, None]
    div_term = jnp.exp(jnp.arange(0, dims, 2, dtype=jnp.float32)
                       * (-np.log(10000.0) / dims))
    pos_emb = jnp.zeros((maxlen, dims), jnp.float32)
    pos_emb = pos_emb.at[:, 0::2].set(jnp.sin(position * div_term))
    pos_emb = pos_emb.at[:, 1::2].set(jnp.cos(position * div_term))

    blocks = []
    for n in range(nblocks):
        bk = jax.random.split(keys[1 + n], 8)
        wq = s * jax.random.normal(bk[0], (dims, dims), jnp.float32)
        wk = s * jax.random.normal(bk[2], (dims, dims), jnp.float32)
        wv = s * jax.random.normal(bk[4], (dims, dims), jnp.float32)
        bq = s * jax.random.normal(bk[1], (1, dims), jnp.float32)
        bkb = s * jax.random.normal(bk[3], (1, dims), jnp.float32)
        bvb = s * jax.random.normal(bk[5], (1, dims), jnp.float32)
        blocks.append(dict(
            # Q, K and V fused into a single (D, 3D) weight -> one MXU push.
            wqkv=jnp.concatenate([wq, wk, wv], axis=1).astype(dtype),
            bqkv=jnp.concatenate([bq, bkb, bvb], axis=1).astype(dtype),
            wo=(s * jax.random.normal(bk[6], (dims, dims), jnp.float32)).astype(dtype),
            bo=(s * jax.random.normal(bk[7], (1, dims), jnp.float32)).astype(dtype),
            ln_g=jnp.ones((1, dims), dtype),
            ln_b=jnp.zeros((1, dims), dtype),
        ))

    w_out = (s * jax.random.normal(keys[-1], (dims, vocab_size), jnp.float32)).astype(dtype)
    b_out = jnp.zeros((1, vocab_size), dtype)
    return dict(emb=emb, pos_emb=pos_emb, blocks=blocks, w_out=w_out, b_out=b_out)


def language_model_forward(token_ids, pad_mask, params, heads,
                           tq=None, tk=None, tv=None, tm=None,
                           logits_dtype=None):
    B, N = token_ids.shape
    act_dtype = params["w_out"].dtype
    # glue: embedding gather + positional-encoding add (plain JAX), then carry
    # activations in the compute dtype to halve HBM traffic.
    x = (params["emb"][token_ids]
         + params["pos_emb"][:N][None, :, :]).astype(act_dtype)
    pm = pad_mask.reshape(B, 1, N).astype(jnp.float32)   # 1 == padded
    for bp in params["blocks"]:
        x = transformer_block(x, pm, bp, heads, tq=tq, tk=tk)
    out_dtype = logits_dtype if logits_dtype is not None else act_dtype
    return output_projection(x, params["w_out"], params["b_out"],
                             out_dtype=out_dtype, tm=tm, tv=tv)


if __name__ == "__main__":
    # Small demo shapes; dims/heads chosen so dims_per_head == 128 keeps the
    # in-kernel head split/merge lane-aligned.  B=2 keeps >=2 parallel grid
    # programs so both v7x TensorCores stay busy.
    B, N = 2, 16
    dims, heads, nblocks = 256, 2, 2
    vocab_size, maxlen, padding_idx = 512, 32, 0

    key = jax.random.PRNGKey(0)
    pkey, tkey = jax.random.split(key)
    params = init_params(pkey, dims, heads, nblocks, vocab_size, maxlen,
                         padding_idx, dtype=jnp.bfloat16)

    tokens = jax.random.randint(tkey, (B, N), 1, vocab_size)
    pad_mask = jnp.zeros((B, N), jnp.float32).at[1, N - 3:].set(1.0)  # 1 == padded
    tokens = jnp.where(pad_mask == 1.0, padding_idx, tokens)

    out = language_model_forward(tokens, pad_mask, params, heads)
    jax.block_until_ready(out)
    assert out.shape == (B, N, vocab_size)
    print("KERNEL_OK")
</pallas_src>

<mosaic_0001>
module attributes {stable_mosaic.version = 11 : i64} {
  func.func @_copy(%arg0: i32, %arg1: memref<8x128xf32, #tpu.memory_space<vmem>>, %arg2: memref<8x128xf32, #tpu.memory_space<vmem>>) attributes {dimension_semantics = [#tpu.dimension_semantics<arbitrary>], iteration_bounds = array<i64: 1>, scalar_prefetch = 0 : i64, scratch_operands = 0 : i64, tpu.core_type = #tpu.core_type<tc>, window_params = [{pipeline_mode = #tpu.pipeline_mode<synchronous>, transform_indices = @transform_0, window_bounds = array<i64: 8, 128>}, {pipeline_mode = #tpu.pipeline_mode<synchronous>, transform_indices = @transform_1, window_bounds = array<i64: 8, 128>}]} {
    %c0 = arith.constant 0 : index
    %c0_0 = arith.constant 0 : index
    %0 = vector.load %arg1[%c0, %c0_0] : memref<8x128xf32, #tpu.memory_space<vmem>>, vector<8x128xf32>
    %c0_1 = arith.constant 0 : index
    %c0_2 = arith.constant 0 : index
    %1 = vector.load %arg2[%c0_1, %c0_2] : memref<8x128xf32, #tpu.memory_space<vmem>>, vector<8x128xf32>
    tpu.vector_store %arg2[%c0_1, %c0_2], %0 {strides = array<i32>} : memref<8x128xf32, #tpu.memory_space<vmem>>, vector<8x128xf32>,
    return
  }
  func.func @transform_0(%arg0: i32) -> (i32, i32) {
    %c0_i32 = arith.constant 0 : i32
    %c0_i32_0 = arith.constant 0 : i32
    %c0_i32_1 = arith.constant 0 : i32
    return %c0_i32, %c0_i32_0 : i32, i32
  }
  func.func @transform_1(%arg0: i32) -> (i32, i32) {
    %c0_i32 = arith.constant 0 : i32
    %c0_i32_0 = arith.constant 0 : i32
    %c0_i32_1 = arith.constant 0 : i32
    return %c0_i32, %c0_i32_0 : i32, i32
  }
}

module attributes {stable_mosaic.version = 11 : i64} {
  func.func @qkv_proj_kernel(%arg0: i32, %arg1: memref<32x256xbf16, #tpu.memory_space<vmem>>, %arg2: memref<256x768xbf16, #tpu.memory_space<vmem>>, %arg3: memref<1x768xbf16, #tpu.memory_space<vmem>>, %arg4: memref<32x256xbf16, #tpu.memory_space<vmem>>, %arg5: memref<32x256xbf16, #tpu.memory_space<vmem>>, %arg6: memref<32x256xbf16, #tpu.memory_space<vmem>>) attributes {dimension_semantics = [#tpu.dimension_semantics<parallel>], iteration_bounds = array<i64: 1>, scalar_prefetch = 0 : i64, scratch_operands = 0 : i64, tpu.core_type = #tpu.core_type<tc>, window_params = [{transform_indices = @transform_0, window_bounds = array<i64: 32, 256>}, {pipeline_mode = #tpu.pipeline_mode<synchronous>, transform_indices = @transform_1, window_bounds = array<i64: 256, 768>}, {pipeline_mode = #tpu.pipeline_mode<synchronous>, transform_indices = @transform_2, window_bounds = array<i64: 1, 768>}, {transform_indices = @transform_3, window_bounds = array<i64: 32, 256>}, {transform_indices = @transform_4, window_bounds = array<i64: 32, 256>}, {transform_indices = @transform_5, window_bounds = array<i64: 32, 256>}]} {
    %c0 = arith.constant 0 : index
    %c0_0 = arith.constant 0 : index
    %0 = vector.load %arg1[%c0, %c0_0] : memref<32x256xbf16, #tpu.memory_space<vmem>>, vector<32x256xbf16>
    %c0_1 = arith.constant 0 : index
    %c0_2 = arith.constant 0 : index
    %1 = vector.load %arg2[%c0_1, %c0_2] : memref<256x768xbf16, #tpu.memory_space<vmem>>, vector<256x768xbf16>
    %cst = arith.constant dense<0.000000e+00> : vector<32x768xf32>
    %2 = tpu.matmul %0, %1, %cst {dimension_numbers = #tpu.dot_dimension_numbers<[1], [0], [0], [1], [0, 0, 1, 1], [], []>} : vector<32x256xbf16>, vector<256x768xbf16>, vector<32x768xf32> -> vector<32x768xf32>
    %c0_3 = arith.constant 0 : index
    %c0_4 = arith.constant 0 : index
    %3 = vector.load %arg3[%c0_3, %c0_4] : memref<1x768xbf16, #tpu.memory_space<vmem>>, vector<1x768xbf16>
    %4 = arith.extf %3 : vector<1x768xbf16> to vector<1x768xf32>
    %5 = vector.broadcast %4 : vector<1x768xf32> to vector<32x768xf32>
    %6 = arith.addf %2, %5 : vector<32x768xf32>
    %7 = vector.extract_strided_slice %6 {offsets = [0, 0], sizes = [32, 256], strides = [1, 1]} : vector<32x768xf32> to vector<32x256xf32>
    %cst_5 = arith.constant 0.0883883461 : f32
    %8 = vector.broadcast %cst_5 : f32 to vector<32x256xf32>
    %9 = arith.mulf %7, %8 : vector<32x256xf32>
    %10 = arith.truncf %9 : vector<32x256xf32> to vector<32x256xbf16>
    %c0_6 = arith.constant 0 : index
    %c0_7 = arith.constant 0 : index
    %11 = vector.load %arg4[%c0_6, %c0_7] : memref<32x256xbf16, #tpu.memory_space<vmem>>, vector<32x256xbf16>
    tpu.vector_store %arg4[%c0_6, %c0_7], %10 {strides = array<i32>} : memref<32x256xbf16, #tpu.memory_space<vmem>>, vector<32x256xbf16>,
    %12 = vector.extract_strided_slice %6 {offsets = [0, 256], sizes = [32, 256], strides = [1, 1]} : vector<32x768xf32> to vector<32x256xf32>
    %13 = arith.truncf %12 : vector<32x256xf32> to vector<32x256xbf16>
    %c0_8 = arith.constant 0 : index
    %c0_9 = arith.constant 0 : index
    %14 = vector.load %arg5[%c0_8, %c0_9] : memref<32x256xbf16, #tpu.memory_space<vmem>>, vector<32x256xbf16>
    tpu.vector_store %arg5[%c0_8, %c0_9], %13 {strides = array<i32>} : memref<32x256xbf16, #tpu.memory_space<vmem>>, vector<32x256xbf16>,
    %15 = vector.extract_strided_slice %6 {offsets = [0, 512], sizes = [32, 256], strides = [1, 1]} : vector<32x768xf32> to vector<32x256xf32>
    %16 = arith.truncf %15 : vector<32x256xf32> to vector<32x256xbf16>
    %c0_10 = arith.constant 0 : index
    %c0_11 = arith.constant 0 : index
    %17 = vector.load %arg6[%c0_10, %c0_11] : memref<32x256xbf16, #tpu.memory_space<vmem>>, vector<32x256xbf16>
    tpu.vector_store %arg6[%c0_10, %c0_11], %16 {strides = array<i32>} : memref<32x256xbf16, #tpu.memory_space<vmem>>, vector<32x256xbf16>,
    return
  }
  func.func @transform_0(%arg0: i32) -> (i32, i32) {
    %c0_i32 = arith.constant 0 : i32
    %c0_i32_0 = arith.constant 0 : i32
    return %arg0, %c0_i32 : i32, i32
  }
  func.func @transform_1(%arg0: i32) -> (i32, i32) {
    %c0_i32 = arith.constant 0 : i32
    %c0_i32_0 = arith.constant 0 : i32
    %c0_i32_1 = arith.constant 0 : i32
    return %c0_i32, %c0_i32_0 : i32, i32
  }
  func.func @transform_2(%arg0: i32) -> (i32, i32) {
    %c0_i32 = arith.constant 0 : i32
    %c0_i32_0 = arith.constant 0 : i32
    %c0_i32_1 = arith.constant 0 : i32
    return %c0_i32, %c0_i32_0 : i32, i32
  }
  func.func @transform_3(%arg0: i32) -> (i32, i32) {
    %c0_i32 = arith.constant 0 : i32
    %c0_i32_0 = arith.constant 0 : i32
    return %arg0, %c0_i32 : i32, i32
  }
  func.func @transform_4(%arg0: i32) -> (i32, i32) {
    %c0_i32 = arith.constant 0 : i32
    %c0_i32_0 = arith.constant 0 : i32
    return %arg0, %c0_i32 : i32, i32
  }
  func.func @transform_5(%arg0: i32) -> (i32, i32) {
    %c0_i32 = arith.constant 0 : i32
    %c0_i32_0 = arith.constant 0 : i32
    return %arg0, %c0_i32 : i32, i32
  }
}

</mosaic_0001>

<llo_original>
// kernel: tpu_custom_call.1
$region0: #{tpu_custom_call.1}
  #allocation0 [shape = 'u32[]', space=smem, size = 0x4, offset = 0x4, fixed_abs, tag = 'smem constant byte address 0x4 - core index']
  #allocation1 [shape = 'u32[144,128]{1,0:T(1,128)}', space=vmem, size = 0x12000, scoped, tag = 'internal scratch']
  %s0 = inlined_call_operand.hbm [shape: f32[8,128], index: 0, kind: input, shape index: {}]
  %s1 = inlined_call_operand.hbm [shape: f32[8,128], index: 1, kind: output, shape index: {}]
  %s2 = sld [smem:[#allocation0]]
  $region18: #{tpu_custom_call.1} parent=0
    _
  %s4 = ssub.s32 1, %s2
  %s5 = scalar_select 0, %s4, %s2
  $region1: #{tpu_custom_call.1} parent=0
    #allocation2 [shape = 'u8[4096]{0}', space=vmem, size = 0x1000, scoped, tag = 'input window, operand 0, single buffered']
    #allocation3 [shape = 's32[1]{0}', space=sflag, size = 0x4, scoped, tag = 'scoped memory for tpu_custom_call.1']
    #allocation4 [shape = 's32[1]{0}', space=sflag, size = 0x4, scoped, tag = 'scoped memory for tpu_custom_call.1']
    #allocation5 [shape = 'u8[4096]{0}', space=vmem, size = 0x1000, scoped, tag = 'output window, operand 0, single buffered']
    %6 = vsyncpa [#allocation3], 0
    %7 = vsyncpa [#allocation4], 0
    // Predicated region
    $region2: #{tpu_custom_call.1} parent=1 // pred_check
      _
    $region3: #{tpu_custom_call.1} parent=1 // pred_check_branch
      %9 = sbr.rel (0) target = $region5
    $region4: #{tpu_custom_call.1} parent=1 // pred_region
      %s11 = ssub.s32 128, 128
      %12 = vsyncadd [#allocation3], %s11
      %s14 = sshll.u32 [#allocation2], 4
      %s15 = int_to_ptr.vmem [resolvable:$true] %s14
      %17 = dma.hbm_to_vmem [thread:$0]  %s0, 128, %s15, [#allocation3]
    $region5: #{tpu_custom_call.1} parent=1 // pred_fallthru
      _
    // Predicated region
    $region6: #{tpu_custom_call.1} parent=1 // pred_check
      _
    $region7: #{tpu_custom_call.1} parent=1 // pred_check_branch
      %19 = sbr.rel (0) target = $region9
    $region8: #{tpu_custom_call.1} parent=1 // pred_region
      %20 = dma.done [#allocation3], 128
    $region9: #{tpu_custom_call.1} parent=1 // pred_fallthru
      _
    %v21 = vld [vmem:[#allocation2] sm:$0xff]
    %22 = vst [vmem:[#allocation5] sm:$0xff] %v21
    // Predicated region
    $region10: #{tpu_custom_call.1} parent=1 // pred_check
      _
    $region11: #{tpu_custom_call.1} parent=1 // pred_check_branch
      %24 = sbr.rel (0) target = $region13
    $region12: #{tpu_custom_call.1} parent=1 // pred_region
      %s26 = ssub.s32 128, 128
      %27 = vsyncadd [#allocation4], %s26
      %s29 = sshll.u32 [#allocation5], 4
      %s30 = int_to_ptr.vmem [resolvable:$true] %s29
      %32 = dma.vmem_to_hbm [thread:$0]  %s30, 128, %s1, [#allocation4]
    $region13: #{tpu_custom_call.1} parent=1 // pred_fallthru
      _
    // Predicated region
    $region14: #{tpu_custom_call.1} parent=1 // pred_check
      _
    $region15: #{tpu_custom_call.1} parent=1 // pred_check_branch
      %34 = sbr.rel (0) target = $region17
    $region16: #{tpu_custom_call.1} parent=1 // pred_region
      %35 = dma.done [#allocation4], 128
    $region17: #{tpu_custom_call.1} parent=1 // pred_fallthru
      _
    %36 = vsyncpa [#allocation3], 1
    %37 = vsyncpa [#allocation4], 1

// kernel: tpu_custom_call.1
$region0: #{tpu_custom_call.1}
  #allocation0 [shape = 'u32[]', space=smem, size = 0x4, offset = 0x4, fixed_abs, tag = 'smem constant byte address 0x4 - core index']
  #allocation1 [shape = 'u32[144,128]{1,0:T(1,128)}', space=vmem, size = 0x12000, scoped, tag = 'internal scratch']
  %s0 = inlined_call_operand.hbm [shape: bf16[32,256], index: 0, kind: input, shape index: {}]
  %s1 = inlined_call_operand.hbm [shape: bf16[256,768], index: 1, kind: input, shape index: {}]
  %s2 = inlined_call_operand.hbm [shape: bf16[1,768], index: 2, kind: input, shape index: {}]
  %s3 = inlined_call_operand.hbm [shape: bf16[32,256], index: 3, kind: output, shape index: {0}]
  %s4 = inlined_call_operand.hbm [shape: bf16[32,256], index: 4, kind: output, shape index: {1}]
  %s5 = inlined_call_operand.hbm [shape: bf16[32,256], index: 5, kind: output, shape index: {2}]
  %6 = xla_tuple %s3, %s4, %s5
  %s7 = sld [smem:[#allocation0]]
  $region50: #{tpu_custom_call.1} parent=0
    _
  %s9 = ssub.s32 1, %s7
  %s10 = scalar_select 0, %s9, %s7
  $region1: #{tpu_custom_call.1} parent=0
    #allocation2 [shape = 'u8[16384]{0}', space=vmem, size = 0x4000, scoped, tag = 'input window, operand 0, single buffered']
    #allocation3 [shape = 's32[1]{0}', space=sflag, size = 0x4, scoped, tag = 'scoped memory for tpu_custom_call.1']
    #allocation4 [shape = 's32[1]{0}', space=sflag, size = 0x4, scoped, tag = 'scoped memory for tpu_custom_call.1']
    #allocation5 [shape = 'u8[393216]{0}', space=vmem, size = 0x60000, scoped, tag = 'input window, operand 1, single buffered']
    #allocation6 [shape = 's32[1]{0}', space=sflag, size = 0x4, scoped, tag = 'scoped memory for tpu_custom_call.1']
    #allocation7 [shape = 'u8[3072]{0}', space=vmem, size = 0xc00, scoped, tag = 'input window, operand 2, single buffered']
    #allocation8 [shape = 'u8[16384]{0}', space=vmem, size = 0x4000, scoped, tag = 'output window, operand 0, single buffered']
    #allocation9 [shape = 'u8[16384]{0}', space=vmem, size = 0x4000, scoped, tag = 'output window, operand 1, single buffered']
    #allocation10 [shape = 's32[1]{0}', space=sflag, size = 0x4, scoped, tag = 'scoped memory for tpu_custom_call.1']
    #allocation11 [shape = 'u8[16384]{0}', space=vmem, size = 0x4000, scoped, tag = 'output window, operand 2, single buffered']
    %11 = vsyncpa [#allocation3], 0
    %12 = vsyncpa [#allocation6], 0
    %13 = vsyncpa [#allocation4], 0
    %14 = vsyncpa [#allocation10], 0
    // Predicated region
    $region2: #{tpu_custom_call.1} parent=1 // pred_check
      _
    $region3: #{tpu_custom_call.1} parent=1 // pred_check_branch
      %16 = sbr.rel (0) target = $region5
    $region4: #{tpu_custom_call.1} parent=1 // pred_region
      %s18 = ssub.s32 512, 512
      %19 = vsyncadd [#allocation3], %s18
      %s20 = sshll.u32 [#allocation2], 4
      %s21 = int_to_ptr.vmem [resolvable:$true] %s20
      %26 = dma.hbm_to_vmem [thread:$0]  %s0, 512, %s21, [#allocation3], 128, 128, 8
    $region5: #{tpu_custom_call.1} parent=1 // pred_fallthru
      _
    // Predicated region
    $region6: #{tpu_custom_call.1} parent=1 // pred_check
      _
    $region7: #{tpu_custom_call.1} parent=1 // pred_check_branch
      %28 = sbr.rel (0) target = $region9
    $region8: #{tpu_custom_call.1} parent=1 // pred_region
      %s30 = ssub.s32 12288, 12288
      %31 = vsyncadd [#allocation6], %s30
      %s32 = sshll.u32 [#allocation5], 4
      %s33 = int_to_ptr.vmem [resolvable:$true] %s32
      %38 = dma.hbm_to_vmem [thread:$0]  %s1, 12288, %s33, [#allocation6], 384, 384, 24
    $region9: #{tpu_custom_call.1} parent=1 // pred_fallthru
      _
    // Predicated region
    $region10: #{tpu_custom_call.1} parent=1 // pred_check
      _
    $region11: #{tpu_custom_call.1} parent=1 // pred_check_branch
      %40 = sbr.rel (0) target = $region13
    $region12: #{tpu_custom_call.1} parent=1 // pred_region
      %s42 = ssub.s32 96, 96
      %43 = vsyncadd [#allocation6], %s42
      %s45 = sshll.u32 [#allocation7], 4
      %s46 = int_to_ptr.vmem [resolvable:$true] %s45
      %48 = dma.hbm_to_vmem [thread:$0]  %s2, 96, %s46, [#allocation6]
    $region13: #{tpu_custom_call.1} parent=1 // pred_fallthru
      _
    // Predicated region
    $region14: #{tpu_custom_call.1} parent=1 // pred_check
      _
    $region15: #{tpu_custom_call.1} parent=1 // pred_check_branch
      %50 = sbr.rel (0) target = $region17
    $region16: #{tpu_custom_call.1} parent=1 // pred_region
      %51 = dma.done [#allocation3], 512
    $region17: #{tpu_custom_call.1} parent=1 // pred_fallthru
      _
    // Predicated region
    $region18: #{tpu_custom_call.1} parent=1 // pred_check
      _
    $region19: #{tpu_custom_call.1} parent=1 // pred_check_branch
      %53 = sbr.rel (0) target = $region21
    $region20: #{tpu_custom_call.1} parent=1 // pred_region
      %54 = dma.done [#allocation6], 12288
    $region21: #{tpu_custom_call.1} parent=1 // pred_fallthru
      _
    // Predicated region
    $region22: #{tpu_custom_call.1} parent=1 // pred_check
      _
    $region23: #{tpu_custom_call.1} parent=1 // pred_check_branch
      %56 = sbr.rel (0) target = $region25
    $region24: #{tpu_custom_call.1} parent=1 // pred_region
      %57 = dma.done [#allocation6], 96
    $region25: #{tpu_custom_call.1} parent=1 // pred_fallthru
      _
    %v58 = vld [vmem:[#allocation2] sm:$0xff]
    %v59 = vld [vmem:[#allocation2 + $0x8] sm:$0xff]
    %v60 = vld [vmem:[#allocation2 + $0x10] sm:$0xff]
    %v61 = vld [vmem:[#allocation2 + $0x18] sm:$0xff]
    %v62 = vld [vmem:[#allocation5] sm:$0xff]
    %v63 = vld [vmem:[#allocation5 + $0x8] sm:$0xff]
    %v64 = vld [vmem:[#allocation5 + $0x10] sm:$0xff]
    %v65 = vld [vmem:[#allocation5 + $0x18] sm:$0xff]
    %v66 = vld [vmem:[#allocation5 + $0x20] sm:$0xff]
    %v67 = vld [vmem:[#allocation5 + $0x28] sm:$0xff]
    %v68 = vld [vmem:[#allocation5 + $0x30] sm:$0xff]
    %v69 = vld [vmem:[#allocation5 + $0x38] sm:$0xff]
    %v70 = vld [vmem:[#allocation5 + $0x40] sm:$0xff]
    %v71 = vld [vmem:[#allocation5 + $0x48] sm:$0xff]
    %v72 = vld [vmem:[#allocation5 + $0x50] sm:$0xff]
    %v73 = vld [vmem:[#allocation5 + $0x58] sm:$0xff]
    %v74 = vld [vmem:[#allocation5 + $0x60] sm:$0xff]
    %v75 = vld [vmem:[#allocation5 + $0x68] sm:$0xff]
    %v76 = vld [vmem:[#allocation5 + $0x70] sm:$0xff]
    %v77 = vld [vmem:[#allocation5 + $0x78] sm:$0xff]
    %v78 = vld [vmem:[#allocation5 + $0x80] sm:$0xff]
    %v79 = vld [vmem:[#allocation5 + $0x88] sm:$0xff]
    %v80 = vld [vmem:[#allocation5 + $0x90] sm:$0xff]
    %v81 = vld [vmem:[#allocation5 + $0x98] sm:$0xff]
    %v82 = vld [vmem:[#allocation5 + $0xa0] sm:$0xff]
    %v83 = vld [vmem:[#allocation5 + $0xa8] sm:$0xff]
    %v84 = vld [vmem:[#allocation5 + $0xb0] sm:$0xff]
    %v85 = vld [vmem:[#allocation5 + $0xb8] sm:$0xff]
    %v86 = vld [vmem:[#allocation5 + $0xc0] sm:$0xff]
    %v87 = vld [vmem:[#allocation5 + $0xc8] sm:$0xff]
    %v88 = vld [vmem:[#allocation5 + $0xd0] sm:$0xff]
    %v89 = vld [vmem:[#allocation5 + $0xd8] sm:$0xff]
    %v90 = vld [vmem:[#allocation5 + $0xe0] sm:$0xff]
    %v91 = vld [vmem:[#allocation5 + $0xe8] sm:$0xff]
    %v92 = vld [vmem:[#allocation5 + $0xf0] sm:$0xff]
    %v93 = vld [vmem:[#allocation5 + $0xf8] sm:$0xff]
    %v94 = vld [vmem:[#allocation5 + $0x100] sm:$0xff]
    %v95 = vld [vmem:[#allocation5 + $0x108] sm:$0xff]
    %v96 = vld [vmem:[#allocation5 + $0x110] sm:$0xff]
    %v97 = vld [vmem:[#allocation5 + $0x118] sm:$0xff]
    %v98 = vld [vmem:[#allocation5 + $0x120] sm:$0xff]
    %v99 = vld [vmem:[#allocation5 + $0x128] sm:$0xff]
    %v100 = vld [vmem:[#allocation5 + $0x130] sm:$0xff]
    %v101 = vld [vmem:[#allocation5 + $0x138] sm:$0xff]
    %v102 = vld [vmem:[#allocation5 + $0x140] sm:$0xff]
    %v103 = vld [vmem:[#allocation5 + $0x148] sm:$0xff]
    %v104 = vld [vmem:[#allocation5 + $0x150] sm:$0xff]
    %v105 = vld [vmem:[#allocation5 + $0x158] sm:$0xff]
    %v106 = vld [vmem:[#allocation5 + $0x160] sm:$0xff]
    %v107 = vld [vmem:[#allocation5 + $0x168] sm:$0xff]
    %v108 = vld [vmem:[#allocation5 + $0x170] sm:$0xff]
    %v109 = vld [vmem:[#allocation5 + $0x178] sm:$0xff]
    %v110 = vld [vmem:[#allocation5 + $0x180] sm:$0xff]
    %v111 = vld [vmem:[#allocation5 + $0x188] sm:$0xff]
    %v112 = vld [vmem:[#allocation5 + $0x190] sm:$0xff]
    %v113 = vld [vmem:[#allocation5 + $0x198] sm:$0xff]
    %v114 = vld [vmem:[#allocation5 + $0x1a0] sm:$0xff]
    %v115 = vld [vmem:[#allocation5 + $0x1a8] sm:$0xff]
    %v116 = vld [vmem:[#allocation5 + $0x1b0] sm:$0xff]
    %v117 = vld [vmem:[#allocation5 + $0x1b8] sm:$0xff]
    %v118 = vld [vmem:[#allocation5 + $0x1c0] sm:$0xff]
    %v119 = vld [vmem:[#allocation5 + $0x1c8] sm:$0xff]
    %v120 = vld [vmem:[#allocation5 + $0x1d0] sm:$0xff]
    %v121 = vld [vmem:[#allocation5 + $0x1d8] sm:$0xff]
    %v122 = vld [vmem:[#allocation5 + $0x1e0] sm:$0xff]
    %v123 = vld [vmem:[#allocation5 + $0x1e8] sm:$0xff]
    %v124 = vld [vmem:[#allocation5 + $0x1f0] sm:$0xff]
    %v125 = vld [vmem:[#allocation5 + $0x1f8] sm:$0xff]
    %v126 = vld [vmem:[#allocation5 + $0x200] sm:$0xff]
    %v127 = vld [vmem:[#allocation5 + $0x208] sm:$0xff]
    %v128 = vld [vmem:[#allocation5 + $0x210] sm:$0xff]
    %v129 = vld [vmem:[#allocation5 + $0x218] sm:$0xff]
    %v130 = vld [vmem:[#allocation5 + $0x220] sm:$0xff]
    %v131 = vld [vmem:[#allocation5 + $0x228] sm:$0xff]
    %v132 = vld [vmem:[#allocation5 + $0x230] sm:$0xff]
    %v133 = vld [vmem:[#allocation5 + $0x238] sm:$0xff]
    %v134 = vld [vmem:[#allocation5 + $0x240] sm:$0xff]
    %v135 = vld [vmem:[#allocation5 + $0x248] sm:$0xff]
    %v136 = vld [vmem:[#allocation5 + $0x250] sm:$0xff]
    %v137 = vld [vmem:[#allocation5 + $0x258] sm:$0xff]
    %v138 = vld [vmem:[#allocation5 + $0x260] sm:$0xff]
    %v139 = vld [vmem:[#allocation5 + $0x268] sm:$0xff]
    %v140 = vld [vmem:[#allocation5 + $0x270] sm:$0xff]
    %v141 = vld [vmem:[#allocation5 + $0x278] sm:$0xff]
    %v142 = vld [vmem:[#allocation5 + $0x280] sm:$0xff]
    %v143 = vld [vmem:[#allocation5 + $0x288] sm:$0xff]
    %v144 = vld [vmem:[#allocation5 + $0x290] sm:$0xff]
    %v145 = vld [vmem:[#allocation5 + $0x298] sm:$0xff]
    %v146 = vld [vmem:[#allocation5 + $0x2a0] sm:$0xff]
    %v147 = vld [vmem:[#allocation5 + $0x2a8] sm:$0xff]
    %v148 = vld [vmem:[#allocation5 + $0x2b0] sm:$0xff]
    %v149 = vld [vmem:[#allocation5 + $0x2b8] sm:$0xff]
    %v150 = vld [vmem:[#allocation5 + $0x2c0] sm:$0xff]
    %v151 = vld [vmem:[#allocation5 + $0x2c8] sm:$0xff]
    %v152 = vld [vmem:[#allocation5 + $0x2d0] sm:$0xff]
    %v153 = vld [vmem:[#allocation5 + $0x2d8] sm:$0xff]
    %v154 = vld [vmem:[#allocation5 + $0x2e0] sm:$0xff]
    %v155 = vld [vmem:[#allocation5 + $0x2e8] sm:$0xff]
    %v156 = vld [vmem:[#allocation5 + $0x2f0] sm:$0xff]
    %v157 = vld [vmem:[#allocation5 + $0x2f8] sm:$0xff]
    %v158 = vld [vmem:[#allocation7] sm:$0x3f]
    %v159 = vunpack.c.l.bf16 %v158
    %v160 = vunpack.c.h.bf16 %v158
    %v163 = vlaneseq
    %v164 = vshrl.u32 %v163, 7
    %v165 = vsub.s32 0, %v164
    %v166 = vrot.slane %v159, %v165
    %v167 = vlaneseq
    %v168 = vshrl.u32 %v167, 7
    %v169 = vsub.s32 2, %v168
    %v170 = vrot.slane %v159, %v169
    %v171 = vlaneseq
    %v172 = vshrl.u32 %v171, 7
    %v173 = vsub.s32 4, %v172
    %v174 = vrot.slane %v159, %v173
    %v175 = vlaneseq
    %v176 = vshrl.u32 %v175, 7
    %v177 = vsub.s32 6, %v176
    %v178 = vrot.slane %v159, %v177
    %v179 = vlaneseq
    %v180 = vshrl.u32 %v179, 7
    %v181 = vsub.s32 0, %v180
    %v182 = vrot.slane %v160, %v181
    %v183 = vlaneseq
    %v184 = vshrl.u32 %v183, 7
    %v185 = vsub.s32 2, %v184
    %v186 = vrot.slane %v160, %v185
    %v193 = vlaneseq
    %v194 = vshrl.u32 %v193, 7
    %v195 = vsub.s32 0, %v194
    %v196 = vrot.slane %v166, %v195
    %v197 = vlaneseq
    %v198 = vshrl.u32 %v197, 7
    %v199 = vsub.s32 0, %v198
    %v200 = vrot.slane %v170, %v199
    %v201 = vlaneseq
    %v202 = vshrl.u32 %v201, 7
    %v203 = vsub.s32 0, %v202
    %v204 = vrot.slane %v174, %v203
    %v205 = vlaneseq
    %v206 = vshrl.u32 %v205, 7
    %v207 = vsub.s32 0, %v206
    %v208 = vrot.slane %v178, %v207
    %v209 = vlaneseq
    %v210 = vshrl.u32 %v209, 7
    %v211 = vsub.s32 0, %v210
    %v212 = vrot.slane %v182, %v211
    %v213 = vlaneseq
    %v214 = vshrl.u32 %v213, 7
    %v215 = vsub.s32 0, %v214
    %v216 = vrot.slane %v186, %v215
    %v221 = vunpack.c.l.b16 %v58
    %v222 = vunpack.c.h.b16 %v58
    %v223 = vunpack.c.l.b16 %v59
    %v224 = vunpack.c.h.b16 %v59
    %v225 = vunpack.c.l.b16 %v60
    %v226 = vunpack.c.h.b16 %v60
    %v227 = vunpack.c.l.b16 %v61
    %v228 = vunpack.c.h.b16 %v61
    %v229 = vpack.c.b16 %v223, %v221
    %v230 = vpack.c.b16 %v224, %v222
    %v231 = vpack.c.b16 %v227, %v225
    %v232 = vpack.c.b16 %v228, %v226
    %v333 = vunpack.c.l.b16 %v62
    %v334 = vunpack.c.h.b16 %v62
    %v335 = vunpack.c.l.b16 %v63
    %v336 = vunpack.c.h.b16 %v63
    %v337 = vunpack.c.l.b16 %v64
    %v338 = vunpack.c.h.b16 %v64
    %v339 = vunpack.c.l.b16 %v65
    %v340 = vunpack.c.h.b16 %v65
    %v341 = vunpack.c.l.b16 %v66
    %v342 = vunpack.c.h.b16 %v66
    %v343 = vunpack.c.l.b16 %v67
    %v344 = vunpack.c.h.b16 %v67
    %v345 = vunpack.c.l.b16 %v68
    %v346 = vunpack.c.h.b16 %v68
    %v347 = vunpack.c.l.b16 %v69
    %v348 = vunpack.c.h.b16 %v69
    %v349 = vunpack.c.l.b16 %v70
    %v350 = vunpack.c.h.b16 %v70
    %v351 = vunpack.c.l.b16 %v71
    %v352 = vunpack.c.h.b16 %v71
    %v353 = vunpack.c.l.b16 %v72
    %v354 = vunpack.c.h.b16 %v72
    %v355 = vunpack.c.l.b16 %v73
    %v356 = vunpack.c.h.b16 %v73
    %v357 = vunpack.c.l.b16 %v74
    %v358 = vunpack.c.h.b16 %v74
    %v359 = vunpack.c.l.b16 %v75
    %v360 = vunpack.c.h.b16 %v75
    %v361 = vunpack.c.l.b16 %v76
    %v362 = vunpack.c.h.b16 %v76
    %v363 = vunpack.c.l.b16 %v77
    %v364 = vunpack.c.h.b16 %v77
    %v365 = vunpack.c.l.b16 %v78
    %v366 = vunpack.c.h.b16 %v78
    %v367 = vunpack.c.l.b16 %v79
    %v368 = vunpack.c.h.b16 %v79
    %v369 = vunpack.c.l.b16 %v80
    %v370 = vunpack.c.h.b16 %v80
    %v371 = vunpack.c.l.b16 %v81
    %v372 = vunpack.c.h.b16 %v81
    %v373 = vunpack.c.l.b16 %v82
    %v374 = vunpack.c.h.b16 %v82
    %v375 = vunpack.c.l.b16 %v83
    %v376 = vunpack.c.h.b16 %v83
    %v377 = vunpack.c.l.b16 %v84
    %v378 = vunpack.c.h.b16 %v84
    %v379 = vunpack.c.l.b16 %v85
    %v380 = vunpack.c.h.b16 %v85
    %v381 = vunpack.c.l.b16 %v86
    %v382 = vunpack.c.h.b16 %v86
    %v383 = vunpack.c.l.b16 %v87
    %v384 = vunpack.c.h.b16 %v87
    %v385 = vunpack.c.l.b16 %v88
    %v386 = vunpack.c.h.b16 %v88
    %v387 = vunpack.c.l.b16 %v89
    %v388 = vunpack.c.h.b16 %v89
    %v389 = vunpack.c.l.b16 %v90
    %v390 = vunpack.c.h.b16 %v90
    %v391 = vunpack.c.l.b16 %v91
    %v392 = vunpack.c.h.b16 %v91
    %v393 = vunpack.c.l.b16 %v92
    %v394 = vunpack.c.h.b16 %v92
    %v395 = vunpack.c.l.b16 %v93
    %v396 = vunpack.c.h.b16 %v93
    %v397 = vunpack.c.l.b16 %v94
    %v398 = vunpack.c.h.b16 %v94
    %v399 = vunpack.c.l.b16 %v95
    %v400 = vunpack.c.h.b16 %v95
    %v401 = vunpack.c.l.b16 %v96
    %v402 = vunpack.c.h.b16 %v96
    %v403 = vunpack.c.l.b16 %v97
    %v404 = vunpack.c.h.b16 %v97
    %v405 = vunpack.c.l.b16 %v98
    %v406 = vunpack.c.h.b16 %v98
    %v407 = vunpack.c.l.b16 %v99
    %v408 = vunpack.c.h.b16 %v99
    %v409 = vunpack.c.l.b16 %v100
    %v410 = vunpack.c.h.b16 %v100
    %v411 = vunpack.c.l.b16 %v101
    %v412 = vunpack.c.h.b16 %v101
    %v413 = vunpack.c.l.b16 %v102
    %v414 = vunpack.c.h.b16 %v102
    %v415 = vunpack.c.l.b16 %v103
    %v416 = vunpack.c.h.b16 %v103
    %v417 = vunpack.c.l.b16 %v104
    %v418 = vunpack.c.h.b16 %v104
    %v419 = vunpack.c.l.b16 %v105
    %v420 = vunpack.c.h.b16 %v105
    %v421 = vunpack.c.l.b16 %v106
    %v422 = vunpack.c.h.b16 %v106
    %v423 = vunpack.c.l.b16 %v107
    %v424 = vunpack.c.h.b16 %v107
    %v425 = vunpack.c.l.b16 %v108
    %v426 = vunpack.c.h.b16 %v108
    %v427 = vunpack.c.l.b16 %v109
    %v428 = vunpack.c.h.b16 %v109
    %v429 = vunpack.c.l.b16 %v110
    %v430 = vunpack.c.h.b16 %v110
    %v431 = vunpack.c.l.b16 %v111
    %v432 = vunpack.c.h.b16 %v111
    %v433 = vunpack.c.l.b16 %v112
    %v434 = vunpack.c.h.b16 %v112
    %v435 = vunpack.c.l.b16 %v113
    %v436 = vunpack.c.h.b16 %v113
    %v437 = vunpack.c.l.b16 %v114
    %v438 = vunpack.c.h.b16 %v114
    %v439 = vunpack.c.l.b16 %v115
    %v440 = vunpack.c.h.b16 %v115
    %v441 = vunpack.c.l.b16 %v116
    %v442 = vunpack.c.h.b16 %v116
    %v443 = vunpack.c.l.b16 %v117
    %v444 = vunpack.c.h.b16 %v117
    %v445 = vunpack.c.l.b16 %v118
    %v446 = vunpack.c.h.b16 %v118
    %v447 = vunpack.c.l.b16 %v119
    %v448 = vunpack.c.h.b16 %v119
    %v449 = vunpack.c.l.b16 %v120
    %v450 = vunpack.c.h.b16 %v120
    %v451 = vunpack.c.l.b16 %v121
    %v452 = vunpack.c.h.b16 %v121
    %v453 = vunpack.c.l.b16 %v122
    %v454 = vunpack.c.h.b16 %v122
    %v455 = vunpack.c.l.b16 %v123
    %v456 = vunpack.c.h.b16 %v123
    %v457 = vunpack.c.l.b16 %v124
    %v458 = vunpack.c.h.b16 %v124
    %v459 = vunpack.c.l.b16 %v125
    %v460 = vunpack.c.h.b16 %v125
    %v461 = vunpack.c.l.b16 %v126
    %v462 = vunpack.c.h.b16 %v126
    %v463 = vunpack.c.l.b16 %v127
    %v464 = vunpack.c.h.b16 %v127
    %v465 = vunpack.c.l.b16 %v128
    %v466 = vunpack.c.h.b16 %v128
    %v467 = vunpack.c.l.b16 %v129
    %v468 = vunpack.c.h.b16 %v129
    %v469 = vunpack.c.l.b16 %v130
    %v470 = vunpack.c.h.b16 %v130
    %v471 = vunpack.c.l.b16 %v131
    %v472 = vunpack.c.h.b16 %v131
    %v473 = vunpack.c.l.b16 %v132
    %v474 = vunpack.c.h.b16 %v132
    %v475 = vunpack.c.l.b16 %v133
    %v476 = vunpack.c.h.b16 %v133
    %v477 = vunpack.c.l.b16 %v134
    %v478 = vunpack.c.h.b16 %v134
    %v479 = vunpack.c.l.b16 %v135
    %v480 = vunpack.c.h.b16 %v135
    %v481 = vunpack.c.l.b16 %v136
    %v482 = vunpack.c.h.b16 %v136
    %v483 = vunpack.c.l.b16 %v137
    %v484 = vunpack.c.h.b16 %v137
    %v485 = vunpack.c.l.b16 %v138
    %v486 = vunpack.c.h.b16 %v138
    %v487 = vunpack.c.l.b16 %v139
    %v488 = vunpack.c.h.b16 %v139
    %v489 = vunpack.c.l.b16 %v140
    %v490 = vunpack.c.h.b16 %v140
    %v491 = vunpack.c.l.b16 %v141
    %v492 = vunpack.c.h.b16 %v141
    %v493 = vunpack.c.l.b16 %v142
    %v494 = vunpack.c.h.b16 %v142
    %v495 = vunpack.c.l.b16 %v143
    %v496 = vunpack.c.h.b16 %v143
    %v497 = vunpack.c.l.b16 %v144
    %v498 = vunpack.c.h.b16 %v144
    %v499 = vunpack.c.l.b16 %v145
    %v500 = vunpack.c.h.b16 %v145
    %v501 = vunpack.c.l.b16 %v146
    %v502 = vunpack.c.h.b16 %v146
    %v503 = vunpack.c.l.b16 %v147
    %v504 = vunpack.c.h.b16 %v147
    %v505 = vunpack.c.l.b16 %v148
    %v506 = vunpack.c.h.b16 %v148
    %v507 = vunpack.c.l.b16 %v149
    %v508 = vunpack.c.h.b16 %v149
    %v509 = vunpack.c.l.b16 %v150
    %v510 = vunpack.c.h.b16 %v150
    %v511 = vunpack.c.l.b16 %v151
    %v512 = vunpack.c.h.b16 %v151
    %v513 = vunpack.c.l.b16 %v152
    %v514 = vunpack.c.h.b16 %v152
    %v515 = vunpack.c.l.b16 %v153
    %v516 = vunpack.c.h.b16 %v153
    %v517 = vunpack.c.l.b16 %v154
    %v518 = vunpack.c.h.b16 %v154
    %v519 = vunpack.c.l.b16 %v155
    %v520 = vunpack.c.h.b16 %v155
    %v521 = vunpack.c.l.b16 %v156
    %v522 = vunpack.c.h.b16 %v156
    %v523 = vunpack.c.l.b16 %v157
    %v524 = vunpack.c.h.b16 %v157
    %v525 = vpack.c.b16 %v339, %v333
    %v526 = vpack.c.b16 %v340, %v334
    %v527 = vpack.c.b16 %v341, %v335
    %v528 = vpack.c.b16 %v342, %v336
    %v529 = vpack.c.b16 %v343, %v337
    %v530 = vpack.c.b16 %v344, %v338
    %v531 = vpack.c.b16 %v351, %v345
    %v532 = vpack.c.b16 %v352, %v346
    %v533 = vpack.c.b16 %v353, %v347
    %v534 = vpack.c.b16 %v354, %v348
    %v535 = vpack.c.b16 %v355, %v349
    %v536 = vpack.c.b16 %v356, %v350
    %v537 = vpack.c.b16 %v363, %v357
    %v538 = vpack.c.b16 %v364, %v358
    %v539 = vpack.c.b16 %v365, %v359
    %v540 = vpack.c.b16 %v366, %v360
    %v541 = vpack.c.b16 %v367, %v361
    %v542 = vpack.c.b16 %v368, %v362
    %v543 = vpack.c.b16 %v375, %v369
    %v544 = vpack.c.b16 %v376, %v370
    %v545 = vpack.c.b16 %v377, %v371
    %v546 = vpack.c.b16 %v378, %v372
    %v547 = vpack.c.b16 %v379, %v373
    %v548 = vpack.c.b16 %v380, %v374
    %v549 = vpack.c.b16 %v387, %v381
    %v550 = vpack.c.b16 %v388, %v382
    %v551 = vpack.c.b16 %v389, %v383
    %v552 = vpack.c.b16 %v390, %v384
    %v553 = vpack.c.b16 %v391, %v385
    %v554 = vpack.c.b16 %v392, %v386
    %v555 = vpack.c.b16 %v399, %v393
    %v556 = vpack.c.b16 %v400, %v394
    %v557 = vpack.c.b16 %v401, %v395
    %v558 = vpack.c.b16 %v402, %v396
    %v559 = vpack.c.b16 %v403, %v397
    %v560 = vpack.c.b16 %v404, %v398
    %v561 = vpack.c.b16 %v411, %v405
    %v562 = vpack.c.b16 %v412, %v406
    %v563 = vpack.c.b16 %v413, %v407
    %v564 = vpack.c.b16 %v414, %v408
    %v565 = vpack.c.b16 %v415, %v409
    %v566 = vpack.c.b16 %v416, %v410
    %v567 = vpack.c.b16 %v423, %v417
    %v568 = vpack.c.b16 %v424, %v418
    %v569 = vpack.c.b16 %v425, %v419
    %v570 = vpack.c.b16 %v426, %v420
    %v571 = vpack.c.b16 %v427, %v421
    %v572 = vpack.c.b16 %v428, %v422
    %v573 = vpack.c.b16 %v435, %v429
    %v574 = vpack.c.b16 %v436, %v430
    %v575 = vpack.c.b16 %v437, %v431
    %v576 = vpack.c.b16 %v438, %v432
    %v577 = vpack.c.b16 %v439, %v433
    %v578 = vpack.c.b16 %v440, %v434
    %v579 = vpack.c.b16 %v447, %v441
    %v580 = vpack.c.b16 %v448, %v442
    %v581 = vpack.c.b16 %v449, %v443
    %v582 = vpack.c.b16 %v450, %v444
    %v583 = vpack.c.b16 %v451, %v445
    %v584 = vpack.c.b16 %v452, %v446
    %v585 = vpack.c.b16 %v459, %v453
    %v586 = vpack.c.b16 %v460, %v454
    %v587 = vpack.c.b16 %v461, %v455
    %v588 = vpack.c.b16 %v462, %v456
    %v589 = vpack.c.b16 %v463, %v457
    %v590 = vpack.c.b16 %v464, %v458
    %v591 = vpack.c.b16 %v471, %v465
    %v592 = vpack.c.b16 %v472, %v466
    %v593 = vpack.c.b16 %v473, %v467
    %v594 = vpack.c.b16 %v474, %v468
    %v595 = vpack.c.b16 %v475, %v469
    %v596 = vpack.c.b16 %v476, %v470
    %v597 = vpack.c.b16 %v483, %v477
    %v598 = vpack.c.b16 %v484, %v478
    %v599 = vpack.c.b16 %v485, %v479
    %v600 = vpack.c.b16 %v486, %v480
    %v601 = vpack.c.b16 %v487, %v481
    %v602 = vpack.c.b16 %v488, %v482
    %v603 = vpack.c.b16 %v495, %v489
    %v604 = vpack.c.b16 %v496, %v490
    %v605 = vpack.c.b16 %v497, %v491
    %v606 = vpack.c.b16 %v498, %v492
    %v607 = vpack.c.b16 %v499, %v493
    %v608 = vpack.c.b16 %v500, %v494
    %v609 = vpack.c.b16 %v507, %v501
    %v610 = vpack.c.b16 %v508, %v502
    %v611 = vpack.c.b16 %v509, %v503
    %v612 = vpack.c.b16 %v510, %v504
    %v613 = vpack.c.b16 %v511, %v505
    %v614 = vpack.c.b16 %v512, %v506
    %v615 = vpack.c.b16 %v519, %v513
    %v616 = vpack.c.b16 %v520, %v514
    %v617 = vpack.c.b16 %v521, %v515
    %v618 = vpack.c.b16 %v522, %v516
    %v619 = vpack.c.b16 %v523, %v517
    %v620 = vpack.c.b16 %v524, %v518
    %717 = vmatprep.subr.bf16.mxu0 %v526
    %718 = vmatpush1.bf16.msra.mxu0 %v525
    %719 = vmatprep.subr.bf16.mxu0 %v532
    %720 = vmatpush1.bf16.msra.mxu0 %v531
    %721 = vmatprep.subr.bf16.mxu0 %v538
    %722 = vmatpush1.bf16.msra.mxu0 %v537
    %723 = vmatprep.subr.bf16.mxu0 %v544
    %724 = vmatpush1.bf16.msra.mxu0 %v543
    %725 = vmatprep.subr.bf16.mxu0 %v550
    %726 = vmatpush1.bf16.msra.mxu0 %v549
    %727 = vmatprep.subr.bf16.mxu0 %v556
    %728 = vmatpush1.bf16.msra.mxu0 %v555
    %729 = vmatprep.subr.bf16.mxu0 %v562
    %730 = vmatpush1.bf16.msra.mxu0 %v561
    %731 = vmatprep.subr.bf16.mxu0 %v568
    %732 = vmatpush1.bf16.msra.mxu0 %v567
    %733 = vmatprep.subr.bf16.mxu0 %v574
    %734 = vmatpush1.bf16.msra.mxu0 %v573
    %735 = vmatprep.subr.bf16.mxu0 %v580
    %736 = vmatpush1.bf16.msra.mxu0 %v579
    %737 = vmatprep.subr.bf16.mxu0 %v586
    %738 = vmatpush1.bf16.msra.mxu0 %v585
    %739 = vmatprep.subr.bf16.mxu0 %v592
    %740 = vmatpush1.bf16.msra.mxu0 %v591
    %741 = vmatprep.subr.bf16.mxu0 %v598
    %742 = vmatpush1.bf16.msra.mxu0 %v597
    %743 = vmatprep.subr.bf16.mxu0 %v604
    %744 = vmatpush1.bf16.msra.mxu0 %v603
    %745 = vmatprep.subr.bf16.mxu0 %v610
    %746 = vmatpush1.bf16.msra.mxu0 %v609
    %747 = vmatprep.subr.bf16.mxu0 %v616
    %748 = vmatpush1.bf16.msra.mxu0 %v615
    %749 = vmatprep.mubr.bf16.mxu0 %v230
    %750 = vmatmul.mubr.bf16.gmra.mrb[0].mxu0 %v229
    %v751 = vpop.f32.mrb[0].mxu0
    %v752 = vadd.f32 %v196, %v751
    %v753 = vpop.f32.mrb[0].mxu0
    %v754 = vadd.f32 %v200, %v753
    %v755 = vpop.f32.mrb[0].mxu0
    %v756 = vadd.f32 %v196, %v755
    %v757 = vpop.f32.mrb[0].mxu0
    %v758 = vadd.f32 %v200, %v757
    %759 = vmatprep.mubr.bf16.mxu0 %v232
    %760 = vmatmul.mubr.bf16.gmra.mrb[0].mxu0 %v231
    %v761 = vpop.f32.mrb[0].mxu0
    %v762 = vadd.f32 %v196, %v761
    %v763 = vpop.f32.mrb[0].mxu0
    %v764 = vadd.f32 %v200, %v763
    %v765 = vpop.f32.mrb[0].mxu0
    %v766 = vadd.f32 %v196, %v765
    %v767 = vpop.f32.mrb[0].mxu0
    %v768 = vadd.f32 %v200, %v767
    %769 = vdwg.mxu0
    %770 = vmatprep.subr.bf16.mxu0 %v528
    %771 = vmatpush1.bf16.msra.mxu0 %v527
    %772 = vmatprep.subr.bf16.mxu0 %v534
    %773 = vmatpush1.bf16.msra.mxu0 %v533
    %774 = vmatprep.subr.bf16.mxu0 %v540
    %775 = vmatpush1.bf16.msra.mxu0 %v539
    %776 = vmatprep.subr.bf16.mxu0 %v546
    %777 = vmatpush1.bf16.msra.mxu0 %v545
    %778 = vmatprep.subr.bf16.mxu0 %v552
    %779 = vmatpush1.bf16.msra.mxu0 %v551
    %780 = vmatprep.subr.bf16.mxu0 %v558
    %781 = vmatpush1.bf16.msra.mxu0 %v557
    %782 = vmatprep.subr.bf16.mxu0 %v564
    %783 = vmatpush1.bf16.msra.mxu0 %v563
    %784 = vmatprep.subr.bf16.mxu0 %v570
    %785 = vmatpush1.bf16.msra.mxu0 %v569
    %786 = vmatprep.subr.bf16.mxu0 %v576
    %787 = vmatpush1.bf16.msra.mxu0 %v575
    %788 = vmatprep.subr.bf16.mxu0 %v582
    %789 = vmatpush1.bf16.msra.mxu0 %v581
    %790 = vmatprep.subr.bf16.mxu0 %v588
    %791 = vmatpush1.bf16.msra.mxu0 %v587
    %792 = vmatprep.subr.bf16.mxu0 %v594
    %793 = vmatpush1.bf16.msra.mxu0 %v593
    %794 = vmatprep.subr.bf16.mxu0 %v600
    %795 = vmatpush1.bf16.msra.mxu0 %v599
    %796 = vmatprep.subr.bf16.mxu0 %v606
    %797 = vmatpush1.bf16.msra.mxu0 %v605
    %798 = vmatprep.subr.bf16.mxu0 %v612
    %799 = vmatpush1.bf16.msra.mxu0 %v611
    %800 = vmatprep.subr.bf16.mxu0 %v618
    %801 = vmatpush1.bf16.msra.mxu0 %v617
    %802 = vmatprep.mubr.bf16.mxu0 %v230
    %803 = vmatmul.mubr.bf16.gmra.mrb[0].mxu0 %v229
    %v804 = vpop.f32.mrb[0].mxu0
    %v805 = vadd.f32 %v204, %v804
    %v806 = vpop.f32.mrb[0].mxu0
    %v807 = vadd.f32 %v208, %v806
    %v808 = vpop.f32.mrb[0].mxu0
    %v809 = vadd.f32 %v204, %v808
    %v810 = vpop.f32.mrb[0].mxu0
    %v811 = vadd.f32 %v208, %v810
    %812 = vmatprep.mubr.bf16.mxu0 %v232
    %813 = vmatmul.mubr.bf16.gmra.mrb[0].mxu0 %v231
    %v814 = vpop.f32.mrb[0].mxu0
    %v815 = vadd.f32 %v204, %v814
    %v816 = vpop.f32.mrb[0].mxu0
    %v817 = vadd.f32 %v208, %v816
    %v818 = vpop.f32.mrb[0].mxu0
    %v819 = vadd.f32 %v204, %v818
    %v820 = vpop.f32.mrb[0].mxu0
    %v821 = vadd.f32 %v208, %v820
    %822 = vdwg.mxu0
    %823 = vmatprep.subr.bf16.mxu0 %v530
    %824 = vmatpush1.bf16.msra.mxu0 %v529
    %825 = vmatprep.subr.bf16.mxu0 %v536
    %826 = vmatpush1.bf16.msra.mxu0 %v535
    %827 = vmatprep.subr.bf16.mxu0 %v542
    %828 = vmatpush1.bf16.msra.mxu0 %v541
    %829 = vmatprep.subr.bf16.mxu0 %v548
    %830 = vmatpush1.bf16.msra.mxu0 %v547
    %831 = vmatprep.subr.bf16.mxu0 %v554
    %832 = vmatpush1.bf16.msra.mxu0 %v553
    %833 = vmatprep.subr.bf16.mxu0 %v560
    %834 = vmatpush1.bf16.msra.mxu0 %v559
    %835 = vmatprep.subr.bf16.mxu0 %v566
    %836 = vmatpush1.bf16.msra.mxu0 %v565
    %837 = vmatprep.subr.bf16.mxu0 %v572
    %838 = vmatpush1.bf16.msra.mxu0 %v571
    %839 = vmatprep.subr.bf16.mxu0 %v578
    %840 = vmatpush1.bf16.msra.mxu0 %v577
    %841 = vmatprep.subr.bf16.mxu0 %v584
    %842 = vmatpush1.bf16.msra.mxu0 %v583
    %843 = vmatprep.subr.bf16.mxu0 %v590
    %844 = vmatpush1.bf16.msra.mxu0 %v589
    %845 = vmatprep.subr.bf16.mxu0 %v596
    %846 = vmatpush1.bf16.msra.mxu0 %v595
    %847 = vmatprep.subr.bf16.mxu0 %v602
    %848 = vmatpush1.bf16.msra.mxu0 %v601
    %849 = vmatprep.subr.bf16.mxu0 %v608
    %850 = vmatpush1.bf16.msra.mxu0 %v607
    %851 = vmatprep.subr.bf16.mxu0 %v614
    %852 = vmatpush1.bf16.msra.mxu0 %v613
    %853 = vmatprep.subr.bf16.mxu0 %v620
    %854 = vmatpush1.bf16.msra.mxu0 %v619
    %855 = vmatprep.mubr.bf16.mxu0 %v230
    %856 = vmatmul.mubr.bf16.gmra.mrb[0].mxu0 %v229
    %v857 = vpop.f32.mrb[0].mxu0
    %v858 = vadd.f32 %v212, %v857
    %v859 = vpop.f32.mrb[0].mxu0
    %v860 = vadd.f32 %v216, %v859
    %v861 = vpop.f32.mrb[0].mxu0
    %v862 = vadd.f32 %v212, %v861
    %v863 = vpop.f32.mrb[0].mxu0
    %v864 = vadd.f32 %v216, %v863
    %865 = vmatprep.mubr.bf16.mxu0 %v232
    %866 = vmatmul.mubr.bf16.gmra.mrb[0].mxu0 %v231
    %v867 = vpop.f32.mrb[0].mxu0
    %v868 = vadd.f32 %v212, %v867
    %v869 = vpop.f32.mrb[0].mxu0
    %v870 = vadd.f32 %v216, %v869
    %v871 = vpop.f32.mrb[0].mxu0
    %v872 = vadd.f32 %v212, %v871
    %v873 = vpop.f32.mrb[0].mxu0
    %v874 = vadd.f32 %v216, %v873
    %875 = vdwg.mxu0
    %v876 = vmul.f32 %v752, 0.088388346
    %v877 = vmul.f32 %v754, 0.088388346
    %v878 = vmul.f32 %v756, 0.088388346
    %v879 = vmul.f32 %v758, 0.088388346
    %v880 = vmul.f32 %v762, 0.088388346
    %v881 = vmul.f32 %v764, 0.088388346
    %v882 = vmul.f32 %v766, 0.088388346
    %v883 = vmul.f32 %v768, 0.088388346
    %v884 = vpack.c.bf16 %v878, %v876
    %v885 = vpack.c.bf16 %v879, %v877
    %v886 = vpack.c.bf16 %v882, %v880
    %v887 = vpack.c.bf16 %v883, %v881
    %v892 = vunpack.c.l.b16 %v884
    %v893 = vunpack.c.l.b16 %v885
    %v894 = vunpack.c.h.b16 %v884
    %v895 = vunpack.c.h.b16 %v885
    %v896 = vunpack.c.l.b16 %v886
    %v897 = vunpack.c.l.b16 %v887
    %v898 = vunpack.c.h.b16 %v886
    %v899 = vunpack.c.h.b16 %v887
    %v900 = vpack.c.b16 %v893, %v892
    %v901 = vpack.c.b16 %v895, %v894
    %v902 = vpack.c.b16 %v897, %v896
    %v903 = vpack.c.b16 %v899, %v898
    %908 = vst [vmem:[#allocation8] sm:$0xff] %v900
    %909 = vst [vmem:[#allocation8 + $0x8] sm:$0xff] %v901
    %910 = vst [vmem:[#allocation8 + $0x10] sm:$0xff] %v902
    %911 = vst [vmem:[#allocation8 + $0x18] sm:$0xff] %v903
    %v912 = vpack.c.bf16 %v809, %v805
    %v913 = vpack.c.bf16 %v811, %v807
    %v914 = vpack.c.bf16 %v819, %v815
    %v915 = vpack.c.bf16 %v821, %v817
    %v920 = vunpack.c.l.b16 %v912
    %v921 = vunpack.c.l.b16 %v913
    %v922 = vunpack.c.h.b16 %v912
    %v923 = vunpack.c.h.b16 %v913
    %v924 = vunpack.c.l.b16 %v914
    %v925 = vunpack.c.l.b16 %v915
    %v926 = vunpack.c.h.b16 %v914
    %v927 = vunpack.c.h.b16 %v915
    %v928 = vpack.c.b16 %v921, %v920
    %v929 = vpack.c.b16 %v923, %v922
    %v930 = vpack.c.b16 %v925, %v924
    %v931 = vpack.c.b16 %v927, %v926
    %936 = vst [vmem:[#allocation9] sm:$0xff] %v928
    %937 = vst [vmem:[#allocation9 + $0x8] sm:$0xff] %v929
    %938 = vst [vmem:[#allocation9 + $0x10] sm:$0xff] %v930
    %939 = vst [vmem:[#allocation9 + $0x18] sm:$0xff] %v931
    %v940 = vpack.c.bf16 %v862, %v858
    %v941 = vpack.c.bf16 %v864, %v860
    %v942 = vpack.c.bf16 %v872, %v868
    %v943 = vpack.c.bf16 %v874, %v870
    %v948 = vunpack.c.l.b16 %v940
    %v949 = vunpack.c.l.b16 %v941
    %v950 = vunpack.c.h.b16 %v940
    %v951 = vunpack.c.h.b16 %v941
    %v952 = vunpack.c.l.b16 %v942
    %v953 = vunpack.c.l.b16 %v943
    %v954 = vunpack.c.h.b16 %v942
    %v955 = vunpack.c.h.b16 %v943
    %v956 = vpack.c.b16 %v949, %v948
    %v957 = vpack.c.b16 %v951, %v950
    %v958 = vpack.c.b16 %v953, %v952
    %v959 = vpack.c.b16 %v955, %v954
    %964 = vst [vmem:[#allocation11] sm:$0xff] %v956
    %965 = vst [vmem:[#allocation11 + $0x8] sm:$0xff] %v957
    %966 = vst [vmem:[#allocation11 + $0x10] sm:$0xff] %v958
    %967 = vst [vmem:[#allocation11 + $0x18] sm:$0xff] %v959
    // Predicated region
    $region26: #{tpu_custom_call.1} parent=1 // pred_check
      _
    $region27: #{tpu_custom_call.1} parent=1 // pred_check_branch
      %969 = sbr.rel (0) target = $region29
    $region28: #{tpu_custom_call.1} parent=1 // pred_region
      %s971 = ssub.s32 512, 512
      %972 = vsyncadd [#allocation4], %s971
      %s973 = sshll.u32 [#allocation8], 4
      %s974 = int_to_ptr.vmem [resolvable:$true] %s973
      %979 = dma.vmem_to_hbm [thread:$0]  %s974, 512, %s3, [#allocation4], 128, 128, 8
    $region29: #{tpu_custom_call.1} parent=1 // pred_fallthru
      _
    // Predicated region
    $region30: #{tpu_custom_call.1} parent=1 // pred_check
      _
    $region31: #{tpu_custom_call.1} parent=1 // pred_check_branch
      %981 = sbr.rel (0) target = $region33
    $region32: #{tpu_custom_call.1} parent=1 // pred_region
      %s983 = ssub.s32 512, 512
      %984 = vsyncadd [#allocation10], %s983
      %s985 = sshll.u32 [#allocation9], 4
      %s986 = int_to_ptr.vmem [resolvable:$true] %s985
      %991 = dma.vmem_to_hbm [thread:$0]  %s986, 512, %s4, [#allocation10], 128, 128, 8
    $region33: #{tpu_custom_call.1} parent=1 // pred_fallthru
      _
    // Predicated region
    $region34: #{tpu_custom_call.1} parent=1 // pred_check
      _
    $region35: #{tpu_custom_call.1} parent=1 // pred_check_branch
      %993 = sbr.rel (0) target = $region37
    $region36: #{tpu_custom_call.1} parent=1 // pred_region
      %s995 = ssub.s32 512, 512
      %996 = vsyncadd [#allocation10], %s995
      %s997 = sshll.u32 [#allocation11], 4
      %s998 = int_to_ptr.vmem [resolvable:$true] %s997
      %1003 = dma.vmem_to_hbm [thread:$0]  %s998, 512, %s5, [#allocation10], 128, 128, 8
    $region37: #{tpu_custom_call.1} parent=1 // pred_fallthru
      _
    // Predicated region
    $region38: #{tpu_custom_call.1} parent=1 // pred_check
      _
    $region39: #{tpu_custom_call.1} parent=1 // pred_check_branch
      %1005 = sbr.rel (0) target = $region41
    $region40: #{tpu_custom_call.1} parent=1 // pred_region
      %1006 = dma.done [#allocation4], 512
    $region41: #{tpu_custom_call.1} parent=1 // pred_fallthru
      _
    // Predicated region
    $region42: #{tpu_custom_call.1} parent=1 // pred_check
      _
    $region43: #{tpu_custom_call.1} parent=1 // pred_check_branch
      %1008 = sbr.rel (0) target = $region45
    $region44: #{tpu_custom_call.1} parent=1 // pred_region
      %1009 = dma.done [#allocation10], 512
    $region45: #{tpu_custom_call.1} parent=1 // pred_fallthru
      _
    // Predicated region
    $region46: #{tpu_custom_call.1} parent=1 // pred_check
      _
    $region47: #{tpu_custom_call.1} parent=1 // pred_check_branch
      %1011 = sbr.rel (0) target = $region49
    $region48: #{tpu_custom_call.1} parent=1 // pred_region
      %1012 = dma.done [#allocation10], 512
    $region49: #{tpu_custom_call.1} parent=1 // pred_fallthru
      _
    %1013 = vsyncpa [#allocation3], 1
    %1014 = vsyncpa [#allocation6], 1
    %1015 = vsyncpa [#allocation4], 1
    %1016 = vsyncpa [#allocation10], 1

</llo_original>
